<compile_context>
chip_gen: v5e
topology: v5e:2x2
jax: 0.10.0
libtpu: 0.0.40
codegen_flags: <defaults>
</compile_context>

<pallas_src>
import math

import numpy as np

import jax
import jax.numpy as jnp
from jax.experimental import pallas as pl
from jax.experimental.pallas import tpu as pltpu

# The only three values that ever appear in the output (trace-time constants).
# Note: float64 tanh cast to float32 may differ by 1 ulp from an XLA float32 tanh.
_TANH123 = np.tanh(np.array([1.0, 2.0, 3.0], dtype=np.float64)).astype(np.float32)


def _model_kernel(colpat_ref, ycol_ref, o_ref):
    """Fill one (TR, C) row-tile of the output.

    colpat_ref: (1, C)  row-invariant column pattern (columns >= 1; col 0 is junk)
    ycol_ref:   (TR, 1) per-row y column (identical for every tile: TR % 3 == 0)
    """
    # Lane-dense bulk store: sublane-broadcast the pattern strip over the tile.
    o_ref[...] = jnp.broadcast_to(colpat_ref[...], o_ref.shape)
    # Overwrite column 0 with the per-row y values (narrow (TR, 1) masked store).
    o_ref[:, 0:1] = ycol_ref[...]


def _vmem_capacity_bytes() -> int:
    """Physical VMEM of the local chip; conservative fallback if unavailable."""
    try:
        cap = int(getattr(pltpu.get_tpu_info(), "vmem_capacity_bytes", 0))
        if cap > 0:
            return cap
    except Exception:
        pass
    return 64 * 1024 * 1024  # v7x-sized fallback (safe on every generation)


def _choose_row_tile(R: int, C: int, budget_bytes: int) -> int:
    """Row tile: multiple of 24 (= lcm(8, 3)), fits double-buffered in the VMEM
    budget, and prefers an even number (>= 2) of grid steps (v7x dual-TC)."""
    bytes_per_row = C * 4
    max_tr = max(24, (budget_bytes // (2 * bytes_per_row) // 24) * 24)
    # Aim for an even number of grid steps so the "parallel" axis shards evenly
    # across the two v7x TensorCores (free on single-TC v5e/v6e).
    steps = max(2, -(-R // max_tr))
    if steps % 2:
        steps += 1
    tr = -(-R // steps)                  # ceil(R / steps)
    tr = ((tr + 23) // 24) * 24          # round up to a multiple of 24
    return max(24, min(tr, max_tr))


def model_forward(x: jax.Array) -> jax.Array:
    B = x.shape[0]
    F = math.prod(x.shape[1:])
    # torch.cat on dim=1 requires matching row counts: F must equal 3*B.
    assert F == 3 * B, f"forward only valid when prod(x.shape[1:]) == 3*B (got F={F}, B={B})"
    R = 3 * B
    C = 1 + 2 * F

    vmem_cap = _vmem_capacity_bytes()
    budget = (vmem_cap * 3) // 8         # ~48 MiB on v5e/v6e, ~24 MiB on v7x
    TR = _choose_row_tile(R, C, budget)
    grid = (pl.cdiv(R, TR),)

    # Tile-invariant pattern inputs (tiny: O(C) + O(TR) bytes, built once per shape).
    cols = np.arange(C, dtype=np.int64)
    colpat = _TANH123[(cols - 1) % 3][None, :]                     # (1, C); [0,0] overwritten
    ycol = _TANH123[np.arange(TR, dtype=np.int64) % 3][:, None]    # (TR, 1)

    # x itself is never read: the result is a pure function of its shape.
    return pl.pallas_call(
        _model_kernel,
        out_shape=jax.ShapeDtypeStruct((R, C), jnp.float32),
        grid=grid,
        in_specs=[
            pl.BlockSpec((1, C), lambda i: (0, 0)),
            pl.BlockSpec((TR, 1), lambda i: (0, 0)),
        ],
        out_specs=pl.BlockSpec((TR, C), lambda i: (i, 0)),
        compiler_params=pltpu.CompilerParams(
            dimension_semantics=("parallel",),   # dual-TC sharding on v7x; harmless elsewhere
            vmem_limit_bytes=int(vmem_cap // 2),
        ),
    )(jnp.asarray(colpat), jnp.asarray(ycol))


def _reference(x: jax.Array) -> jax.Array:
    # Pure-JAX reference mirroring the PyTorch forward, for verification.
    B = x.shape[0]
    F = math.prod(x.shape[1:])
    y = jnp.tile(jnp.arange(3, dtype=jnp.int32), B) + 1
    xr = jnp.tile(y[None, :], (F, 1))
    out = jnp.concatenate([y[:, None], xr, xr], axis=1)
    return jnp.tanh(out.astype(jnp.float32))


if __name__ == "__main__":
    key = jax.random.PRNGKey(0)

    # Same shape as the PyTorch test program: x = torch.randn(2, 3, 2)
    x = jax.random.normal(key, (2, 3, 2), dtype=jnp.float32)
    out = model_forward(x)
    jax.block_until_ready(out)
    ref = _reference(x)
    assert out.shape == (6, 13), out.shape
    assert out.dtype == jnp.float32
    assert jnp.allclose(out, ref, atol=1e-6), "mismatch vs reference (small shape)"

    # Larger shape: exercises multiple grid steps and a partial last row-block.
    x2 = jax.random.normal(key, (20, 3, 20), dtype=jnp.float32)
    out2 = model_forward(x2)
    jax.block_until_ready(out2)
    ref2 = _reference(x2)
    assert out2.shape == (60, 121), out2.shape
    assert jnp.allclose(out2, ref2, atol=1e-6), "mismatch vs reference (multi-tile shape)"

    print("KERNEL_OK")
</pallas_src>

<mosaic_0001>
module attributes {stable_mosaic.version = 11 : i64} {
  func.func @_model_kernel(%arg0: i32, %arg1: memref<1x13xf32, #tpu.memory_space<vmem>>, %arg2: memref<24x1xf32, #tpu.memory_space<vmem>>, %arg3: memref<24x13xf32, #tpu.memory_space<vmem>>) attributes {dimension_semantics = [#tpu.dimension_semantics<parallel>], iteration_bounds = array<i64: 1>, scalar_prefetch = 0 : i64, scratch_operands = 0 : i64, tpu.core_type = #tpu.core_type<tc>, window_params = [{pipeline_mode = #tpu.pipeline_mode<synchronous>, transform_indices = @transform_0, window_bounds = array<i64: 1, 13>}, {pipeline_mode = #tpu.pipeline_mode<synchronous>, transform_indices = @transform_1, window_bounds = array<i64: 24, 1>}, {transform_indices = @transform_2, window_bounds = array<i64: 24, 13>}]} {
    %c0 = arith.constant 0 : index
    %c0_0 = arith.constant 0 : index
    %0 = vector.load %arg1[%c0, %c0_0] : memref<1x13xf32, #tpu.memory_space<vmem>>, vector<1x13xf32>
    %1 = vector.shape_cast %0 : vector<1x13xf32> to vector<1x13xf32>
    %2 = vector.broadcast %1 : vector<1x13xf32> to vector<24x13xf32>
    %c0_1 = arith.constant 0 : index
    %c0_2 = arith.constant 0 : index
    %3 = vector.load %arg3[%c0_1, %c0_2] : memref<24x13xf32, #tpu.memory_space<vmem>>, vector<24x13xf32>
    tpu.vector_store %arg3[%c0_1, %c0_2], %2 {strides = array<i32>} : memref<24x13xf32, #tpu.memory_space<vmem>>, vector<24x13xf32>,
    %c0_3 = arith.constant 0 : index
    %c0_4 = arith.constant 0 : index
    %4 = vector.load %arg2[%c0_3, %c0_4] : memref<24x1xf32, #tpu.memory_space<vmem>>, vector<24x1xf32>
    %c0_5 = arith.constant 0 : index
    %c0_6 = arith.constant 0 : index
    %5 = vector.load %arg3[%c0_5, %c0_6] : memref<24x13xf32, #tpu.memory_space<vmem>>, vector<24x1xf32>
    tpu.vector_store %arg3[%c0_5, %c0_6], %4 {strides = array<i32>} : memref<24x13xf32, #tpu.memory_space<vmem>>, vector<24x1xf32>,
    return
  }
  func.func @transform_0(%arg0: i32) -> (i32, i32) {
    %c0_i32 = arith.constant 0 : i32
    %c0_i32_0 = arith.constant 0 : i32
    %c0_i32_1 = arith.constant 0 : i32
    return %c0_i32, %c0_i32_0 : i32, i32
  }
  func.func @transform_1(%arg0: i32) -> (i32, i32) {
    %c0_i32 = arith.constant 0 : i32
    %c0_i32_0 = arith.constant 0 : i32
    %c0_i32_1 = arith.constant 0 : i32
    return %c0_i32, %c0_i32_0 : i32, i32
  }
  func.func @transform_2(%arg0: i32) -> (i32, i32) {
    %c0_i32 = arith.constant 0 : i32
    %c0_i32_0 = arith.constant 0 : i32
    return %arg0, %c0_i32 : i32, i32
  }
}

</mosaic_0001>

<llo_original>
// kernel: tpu_custom_call.1
$region0: #{tpu_custom_call.1}
  #allocation0 [shape = 'u32[]', space=smem, size = 0x4, offset = 0x4, fixed_abs, tag = 'smem constant byte address 0x4 - core index']
  #allocation1 [shape = 'u32[72,128]{1,0:T(1,128)}', space=vmem, size = 0x9000, scoped, tag = 'internal scratch']
  %s0 = inlined_call_operand.vmem [shape: f32[1,13], index: 0, kind: input, shape index: {}]
  %s1 = inlined_call_operand.vmem [shape: f32[24,1], index: 1, kind: input, shape index: {}]
  %s2 = inlined_call_operand.hbm [shape: f32[6,13], index: 2, kind: output, shape index: {}]
  %s3 = sld [smem:[#allocation0]]
  $region18: #{tpu_custom_call.1} parent=0
    _
  %s5 = ssub.s32 1, %s3
  %s6 = scalar_select 0, %s5, %s3
  $region1: #{tpu_custom_call.1} parent=0
    #allocation2 [shape = 'u8[12288]{0}', space=vmem, size = 0x3000, scoped, tag = 'output window, operand 0, single buffered']
    #allocation3 [shape = 's32[1]{0}', space=sflag, size = 0x4, scoped, tag = 'scoped memory for tpu_custom_call.1']
    %7 = vsyncpa [#allocation3], 0
    // Predicated region
    $region2: #{tpu_custom_call.1} parent=1 // pred_check
      _
    $region3: #{tpu_custom_call.1} parent=1 // pred_check_branch
      %9 = sbr.rel (0) target = $region5
    $region4: #{tpu_custom_call.1} parent=1 // pred_region
      _
    $region5: #{tpu_custom_call.1} parent=1 // pred_fallthru
      _
    // Predicated region
    $region6: #{tpu_custom_call.1} parent=1 // pred_check
      _
    $region7: #{tpu_custom_call.1} parent=1 // pred_check_branch
      %11 = sbr.rel (0) target = $region9
    $region8: #{tpu_custom_call.1} parent=1 // pred_region
      _
    $region9: #{tpu_custom_call.1} parent=1 // pred_fallthru
      _
    %v12 = vld [vmem:[%s0] sm:$0x1]
    %v14 = vperm.slane %v12, 0
    %vm16 = vcmask 105472
    %17 = vst.msk [vmem:[#allocation2] sm:$0xff] %vm16, %v14
    %18 = vst.msk [vmem:[#allocation2 + $0x8] sm:$0xff] %vm16, %v14
    %19 = vst.msk [vmem:[#allocation2 + $0x10] sm:$0xff] %vm16, %v14
    %v20 = vld [vmem:[%s1] sm:$0xff]
    %v21 = vld [vmem:[%s1 + $0x8] sm:$0xff]
    %v22 = vld [vmem:[%s1 + $0x10] sm:$0xff]
    %vm23 = vcmask 7168
    %24 = vst.msk [vmem:[#allocation2] sm:$0xff] %vm23, %v20
    %25 = vst.msk [vmem:[#allocation2 + $0x8] sm:$0xff] %vm23, %v21
    %26 = vst.msk [vmem:[#allocation2 + $0x10] sm:$0xff] %vm23, %v22
    // Predicated region
    $region10: #{tpu_custom_call.1} parent=1 // pred_check
      _
    $region11: #{tpu_custom_call.1} parent=1 // pred_check_branch
      %28 = sbr.rel (0) target = $region13
    $region12: #{tpu_custom_call.1} parent=1 // pred_region
      %30 = vsyncadd [#allocation3], 256
      %s31 = sshll.u32 [#allocation2], 4
      %s32 = int_to_ptr.vmem [resolvable:$true] %s31
      %s33 = sshll.u32 %s2, 4
      %s34 = int_to_ptr.hbm [resolvable:$true] %s33
      %39 = dma.vmem_to_hbm [thread:$0]  %s32, 128, %s34, [#allocation3], 128, 128, 8
    $region13: #{tpu_custom_call.1} parent=1 // pred_fallthru
      _
    // Predicated region
    $region14: #{tpu_custom_call.1} parent=1 // pred_check
      _
    $region15: #{tpu_custom_call.1} parent=1 // pred_check_branch
      %41 = sbr.rel (0) target = $region17
    $region16: #{tpu_custom_call.1} parent=1 // pred_region
      %43 = dma.done [#allocation3], 384
    $region17: #{tpu_custom_call.1} parent=1 // pred_fallthru
      _
    %44 = vsyncpa [#allocation3], 1

</llo_original>
